<compile_context>
chip_gen: v6e
topology: v6e:2x2x1
jax: 0.10.0
libtpu: 0.0.40
codegen_flags: <defaults>
</compile_context>

<pallas_src>
import functools
import math

import jax
import jax.numpy as jnp
from jax.experimental import pallas as pl
from jax.experimental.pallas import tpu as pltpu


def _round_up(a, b):
    return ((a + b - 1) // b) * b


def _make_mlp_kernel(num_layers, d_in):
    """Kernel body for an MLP with `num_layers` Linear layers, batch on lanes.

    Kernel args:
      (x0_ref, ..., x_{d_in-1}_ref, w0, b0, ..., w_{L-1}, b_{L-1}, out_ref)
        x_c_ref : (1, tile_n)          one input feature, batch on lanes
        w_l     : (out_l, in_l)        PyTorch weight layout
        b_l     : (out_l, 1)
        out_ref : (d_out_pad, tile_n)
    Hidden layers use the Sine activation; the last layer is linear.
    """

    def kernel(*refs):
        in_refs = refs[:d_in]
        out_ref = refs[-1]
        p = refs[d_in:-1]

        # Layer 0: fused "concat + Linear" as d_in broadcast FMAs (VPU).
        w0 = p[0][...]              # (h0, d_in)
        b0 = p[1][...]              # (h0, 1)
        h = b0 + w0[:, 0:1] * in_refs[0][...]
        for c in range(1, d_in):
            h = h + w0[:, c:c + 1] * in_refs[c][...]
        if num_layers > 1:
            h = jnp.sin(h)          # Sine activation (act='sine')

        # Remaining layers: (out_l, in_l) @ (in_l, tile_n) on the MXU.
        for l in range(1, num_layers):
            w = p[2 * l][...]
            b = p[2 * l + 1][...]
            h = jnp.dot(w, h, preferred_element_type=jnp.float32) + b
            if l < num_layers - 1:
                h = jnp.sin(h)

        out_ref[...] = h.astype(out_ref.dtype)

    return kernel


def init_params(layers_list, key, init_method="xavier_normal"):
    """Deterministic parameter init matching nn.init.xavier_normal_ / zeros_.

    Weights are (out_features, in_features) (PyTorch layout), biases (out, 1).
    """
    params = []
    num_layers = len(layers_list) - 1
    keys = jax.random.split(key, num_layers)
    for l in range(num_layers):
        fan_in, fan_out = layers_list[l], layers_list[l + 1]
        gain = 1.0
        if init_method == "xavier_normal":
            std = gain * math.sqrt(2.0 / (fan_in + fan_out))
            w = std * jax.random.normal(keys[l], (fan_out, fan_in), dtype=jnp.float32)
        elif init_method == "xavier_uniform":
            bound = gain * math.sqrt(6.0 / (fan_in + fan_out))
            w = jax.random.uniform(
                keys[l], (fan_out, fan_in), dtype=jnp.float32,
                minval=-bound, maxval=bound)
        else:
            raise ValueError(f"{init_method} Not implemented yet!")
        b = jnp.zeros((fan_out, 1), dtype=jnp.float32)
        params.append((w, b))
    return params


@functools.partial(jax.jit, static_argnames=("layers_list", "tile_n"))
def neural_net_forward(x, y, t, params_flat, layers_list, tile_n=1024):
    """Forward pass of Neural_Net.

    Args:
      x, y, t: (N, 1) float32 arrays.
      params_flat: flat tuple (w0, b0, w1, b1, ...); wl is (out_l, in_l),
                   bl is (out_l, 1).
      layers_list: static tuple of layer widths, e.g. (3, 32, 32, 2).
      tile_n: batch tile size along the lane axis (multiple of 128). N does
              NOT need to divide it; inputs are lane-padded with zeros.

    Returns:
      Tuple of d_out arrays, each (N, 1), matching torch.tensor_split(out, n, dim=1).
    """
    num_layers = len(layers_list) - 1
    d_in = layers_list[0]
    d_out = layers_list[-1]
    assert d_in == 3, "forward(x, y, t) implies 3 input features"
    assert tile_n % 128 == 0

    N = x.shape[0]

    # Batch on lanes: (N, 1) -> (1, N) is a pure reshape (contiguous), not a transpose.
    feats = [a.reshape(1, N).astype(jnp.float32) for a in (x, y, t)]

    # Big batch tile: full (lane-padded) N when it fits a single tile, else tile_n.
    if N <= tile_n:
        n_pad = _round_up(N, 128)
        tile = n_pad
    else:
        tile = tile_n
        n_pad = _round_up(N, tile)
    grid = (n_pad // tile,)

    if n_pad != N:
        feats = [jnp.pad(a, ((0, 0), (0, n_pad - N))) for a in feats]

    # Pad the output feature dim to the 8-sublane granule -> unmasked stores.
    d_out_pad = _round_up(d_out, 8)
    params = list(params_flat)
    if d_out_pad != d_out:
        params[-2] = jnp.pad(params[-2], ((0, d_out_pad - d_out), (0, 0)))
        params[-1] = jnp.pad(params[-1], ((0, d_out_pad - d_out), (0, 0)))

    # Batch-tiled inputs / output; weights & biases as full untiled VMEM blocks.
    in_specs = [pl.BlockSpec((1, tile), lambda i: (0, i)) for _ in range(d_in)]
    for w, b in zip(params[0::2], params[1::2]):
        in_specs.append(pl.BlockSpec(w.shape, lambda i: (0, 0)))
        in_specs.append(pl.BlockSpec(b.shape, lambda i: (0, 0)))
    out_spec = pl.BlockSpec((d_out_pad, tile), lambda i: (0, i))

    out = pl.pallas_call(
        _make_mlp_kernel(num_layers, d_in),
        out_shape=jax.ShapeDtypeStruct((d_out_pad, n_pad), jnp.float32),
        grid=grid,
        in_specs=in_specs,
        out_specs=out_spec,
        compiler_params=pltpu.CompilerParams(
            dimension_semantics=("parallel",)),
    )(*feats, *params)

    # glue: torch.tensor_split(out, n, dim=1) -> d_out tensors of shape (N, 1).
    # Row slices of (d_out, N) are contiguous; (N,) -> (N, 1) is a reshape.
    return tuple(out[i, :N].reshape(N, 1) for i in range(d_out))


if __name__ == "__main__":
    # Small shapes consistent with the module: layers_list = [3, 32, 32, 2]
    # (input is cat([x, y, t], dim=1) -> 3 features), batch N = 64.
    layers_list = (3, 32, 32, 2)
    N = 64

    key = jax.random.PRNGKey(0)
    k_params, kx, ky, kt = jax.random.split(key, 4)

    params = init_params(layers_list, k_params, init_method="xavier_normal")
    params_flat = tuple(p for wb in params for p in wb)

    x = jax.random.normal(kx, (N, 1), dtype=jnp.float32)
    y = jax.random.normal(ky, (N, 1), dtype=jnp.float32)
    t = jax.random.normal(kt, (N, 1), dtype=jnp.float32)

    outs = neural_net_forward(x, y, t, params_flat, layers_list)
    outs = jax.block_until_ready(outs)

    # Light sanity check against a pure-JAX reference of the same math
    # (standard PyTorch form: X @ W.T + b).
    X = jnp.concatenate([x, y, t], axis=1)
    h = X
    for l, (w, b) in enumerate(params):
        h = jnp.dot(h, w.T, precision=jax.lax.Precision.HIGHEST) + b.reshape(1, -1)
        if l < len(params) - 1:
            h = jnp.sin(h)
    ref = tuple(h[:, i:i + 1] for i in range(layers_list[-1]))
    for o, r in zip(outs, ref):
        assert o.shape == (N, 1)
        assert jnp.max(jnp.abs(o - r)) < 1e-4

    print("KERNEL_OK")
</pallas_src>

<mosaic_0001>
module attributes {stable_mosaic.version = 11 : i64} {
  func.func @kernel(%arg0: i32, %arg1: memref<1x128xf32, #tpu.memory_space<vmem>>, %arg2: memref<1x128xf32, #tpu.memory_space<vmem>>, %arg3: memref<1x128xf32, #tpu.memory_space<vmem>>, %arg4: memref<32x3xf32, #tpu.memory_space<vmem>>, %arg5: memref<32x1xf32, #tpu.memory_space<vmem>>, %arg6: memref<32x32xf32, #tpu.memory_space<vmem>>, %arg7: memref<32x1xf32, #tpu.memory_space<vmem>>, %arg8: memref<8x32xf32, #tpu.memory_space<vmem>>, %arg9: memref<8x1xf32, #tpu.memory_space<vmem>>, %arg10: memref<8x128xf32, #tpu.memory_space<vmem>>) attributes {dimension_semantics = [#tpu.dimension_semantics<parallel>], iteration_bounds = array<i64: 1>, scalar_prefetch = 0 : i64, scratch_operands = 0 : i64, tpu.core_type = #tpu.core_type<tc>, window_params = [{transform_indices = @transform_0, window_bounds = array<i64: 1, 128>}, {transform_indices = @transform_1, window_bounds = array<i64: 1, 128>}, {transform_indices = @transform_2, window_bounds = array<i64: 1, 128>}, {pipeline_mode = #tpu.pipeline_mode<synchronous>, transform_indices = @transform_3, window_bounds = array<i64: 32, 3>}, {pipeline_mode = #tpu.pipeline_mode<synchronous>, transform_indices = @transform_4, window_bounds = array<i64: 32, 1>}, {pipeline_mode = #tpu.pipeline_mode<synchronous>, transform_indices = @transform_5, window_bounds = array<i64: 32, 32>}, {pipeline_mode = #tpu.pipeline_mode<synchronous>, transform_indices = @transform_6, window_bounds = array<i64: 32, 1>}, {pipeline_mode = #tpu.pipeline_mode<synchronous>, transform_indices = @transform_7, window_bounds = array<i64: 8, 32>}, {pipeline_mode = #tpu.pipeline_mode<synchronous>, transform_indices = @transform_8, window_bounds = array<i64: 8, 1>}, {transform_indices = @transform_9, window_bounds = array<i64: 8, 128>}]} {
    %c0 = arith.constant 0 : index
    %c0_0 = arith.constant 0 : index
    %0 = vector.load %arg4[%c0, %c0_0] : memref<32x3xf32, #tpu.memory_space<vmem>>, vector<32x3xf32>
    %c0_1 = arith.constant 0 : index
    %c0_2 = arith.constant 0 : index
    %1 = vector.load %arg5[%c0_1, %c0_2] : memref<32x1xf32, #tpu.memory_space<vmem>>, vector<32x1xf32>
    %2 = vector.extract_strided_slice %0 {offsets = [0, 0], sizes = [32, 1], strides = [1, 1]} : vector<32x3xf32> to vector<32x1xf32>
    %c0_3 = arith.constant 0 : index
    %c0_4 = arith.constant 0 : index
    %3 = vector.load %arg1[%c0_3, %c0_4] : memref<1x128xf32, #tpu.memory_space<vmem>>, vector<1x128xf32>
    %4 = vector.broadcast %2 : vector<32x1xf32> to vector<32x128xf32>
    %5 = vector.broadcast %3 : vector<1x128xf32> to vector<32x128xf32>
    %6 = arith.mulf %4, %5 : vector<32x128xf32>
    %7 = vector.broadcast %1 : vector<32x1xf32> to vector<32x128xf32>
    %8 = arith.addf %7, %6 : vector<32x128xf32>
    %9 = vector.extract_strided_slice %0 {offsets = [0, 1], sizes = [32, 1], strides = [1, 1]} : vector<32x3xf32> to vector<32x1xf32>
    %c0_5 = arith.constant 0 : index
    %c0_6 = arith.constant 0 : index
    %10 = vector.load %arg2[%c0_5, %c0_6] : memref<1x128xf32, #tpu.memory_space<vmem>>, vector<1x128xf32>
    %11 = vector.broadcast %9 : vector<32x1xf32> to vector<32x128xf32>
    %12 = vector.broadcast %10 : vector<1x128xf32> to vector<32x128xf32>
    %13 = arith.mulf %11, %12 : vector<32x128xf32>
    %14 = arith.addf %8, %13 : vector<32x128xf32>
    %15 = vector.extract_strided_slice %0 {offsets = [0, 2], sizes = [32, 1], strides = [1, 1]} : vector<32x3xf32> to vector<32x1xf32>
    %c0_7 = arith.constant 0 : index
    %c0_8 = arith.constant 0 : index
    %16 = vector.load %arg3[%c0_7, %c0_8] : memref<1x128xf32, #tpu.memory_space<vmem>>, vector<1x128xf32>
    %17 = vector.broadcast %15 : vector<32x1xf32> to vector<32x128xf32>
    %18 = vector.broadcast %16 : vector<1x128xf32> to vector<32x128xf32>
    %19 = arith.mulf %17, %18 : vector<32x128xf32>
    %20 = arith.addf %14, %19 : vector<32x128xf32>
    %21 = math.sin %20 : vector<32x128xf32>
    %c0_9 = arith.constant 0 : index
    %c0_10 = arith.constant 0 : index
    %22 = vector.load %arg6[%c0_9, %c0_10] : memref<32x32xf32, #tpu.memory_space<vmem>>, vector<32x32xf32>
    %c0_11 = arith.constant 0 : index
    %c0_12 = arith.constant 0 : index
    %23 = vector.load %arg7[%c0_11, %c0_12] : memref<32x1xf32, #tpu.memory_space<vmem>>, vector<32x1xf32>
    %cst = arith.constant dense<0.000000e+00> : vector<32x128xf32>
    %24 = tpu.matmul %22, %21, %cst {dimension_numbers = #tpu.dot_dimension_numbers<[1], [0], [0], [1], [0, 0, 1, 1], [], []>} : vector<32x32xf32>, vector<32x128xf32>, vector<32x128xf32> -> vector<32x128xf32>
    %25 = vector.broadcast %23 : vector<32x1xf32> to vector<32x128xf32>
    %26 = arith.addf %24, %25 : vector<32x128xf32>
    %27 = math.sin %26 : vector<32x128xf32>
    %c0_13 = arith.constant 0 : index
    %c0_14 = arith.constant 0 : index
    %28 = vector.load %arg8[%c0_13, %c0_14] : memref<8x32xf32, #tpu.memory_space<vmem>>, vector<8x32xf32>
    %c0_15 = arith.constant 0 : index
    %c0_16 = arith.constant 0 : index
    %29 = vector.load %arg9[%c0_15, %c0_16] : memref<8x1xf32, #tpu.memory_space<vmem>>, vector<8x1xf32>
    %cst_17 = arith.constant dense<0.000000e+00> : vector<8x128xf32>
    %30 = tpu.matmul %28, %27, %cst_17 {dimension_numbers = #tpu.dot_dimension_numbers<[1], [0], [0], [1], [0, 0, 1, 1], [], []>} : vector<8x32xf32>, vector<32x128xf32>, vector<8x128xf32> -> vector<8x128xf32>
    %31 = vector.broadcast %29 : vector<8x1xf32> to vector<8x128xf32>
    %32 = arith.addf %30, %31 : vector<8x128xf32>
    %c0_18 = arith.constant 0 : index
    %c0_19 = arith.constant 0 : index
    %33 = vector.load %arg10[%c0_18, %c0_19] : memref<8x128xf32, #tpu.memory_space<vmem>>, vector<8x128xf32>
    tpu.vector_store %arg10[%c0_18, %c0_19], %32 {strides = array<i32>} : memref<8x128xf32, #tpu.memory_space<vmem>>, vector<8x128xf32>,
    return
  }
  func.func @transform_0(%arg0: i32) -> (i32, i32) {
    %c0_i32 = arith.constant 0 : i32
    %c0_i32_0 = arith.constant 0 : i32
    return %c0_i32, %arg0 : i32, i32
  }
  func.func @transform_1(%arg0: i32) -> (i32, i32) {
    %c0_i32 = arith.constant 0 : i32
    %c0_i32_0 = arith.constant 0 : i32
    return %c0_i32, %arg0 : i32, i32
  }
  func.func @transform_2(%arg0: i32) -> (i32, i32) {
    %c0_i32 = arith.constant 0 : i32
    %c0_i32_0 = arith.constant 0 : i32
    return %c0_i32, %arg0 : i32, i32
  }
  func.func @transform_3(%arg0: i32) -> (i32, i32) {
    %c0_i32 = arith.constant 0 : i32
    %c0_i32_0 = arith.constant 0 : i32
    %c0_i32_1 = arith.constant 0 : i32
    return %c0_i32, %c0_i32_0 : i32, i32
  }
  func.func @transform_4(%arg0: i32) -> (i32, i32) {
    %c0_i32 = arith.constant 0 : i32
    %c0_i32_0 = arith.constant 0 : i32
    %c0_i32_1 = arith.constant 0 : i32
    return %c0_i32, %c0_i32_0 : i32, i32
  }
  func.func @transform_5(%arg0: i32) -> (i32, i32) {
    %c0_i32 = arith.constant 0 : i32
    %c0_i32_0 = arith.constant 0 : i32
    %c0_i32_1 = arith.constant 0 : i32
    return %c0_i32, %c0_i32_0 : i32, i32
  }
  func.func @transform_6(%arg0: i32) -> (i32, i32) {
    %c0_i32 = arith.constant 0 : i32
    %c0_i32_0 = arith.constant 0 : i32
    %c0_i32_1 = arith.constant 0 : i32
    return %c0_i32, %c0_i32_0 : i32, i32
  }
  func.func @transform_7(%arg0: i32) -> (i32, i32) {
    %c0_i32 = arith.constant 0 : i32
    %c0_i32_0 = arith.constant 0 : i32
    %c0_i32_1 = arith.constant 0 : i32
    return %c0_i32, %c0_i32_0 : i32, i32
  }
  func.func @transform_8(%arg0: i32) -> (i32, i32) {
    %c0_i32 = arith.constant 0 : i32
    %c0_i32_0 = arith.constant 0 : i32
    %c0_i32_1 = arith.constant 0 : i32
    return %c0_i32, %c0_i32_0 : i32, i32
  }
  func.func @transform_9(%arg0: i32) -> (i32, i32) {
    %c0_i32 = arith.constant 0 : i32
    %c0_i32_0 = arith.constant 0 : i32
    return %c0_i32, %arg0 : i32, i32
  }
}

</mosaic_0001>

<llo_original>
// kernel: neural_net_forward.1
$region0: #{neural_net_forward.1}
  #allocation0 [shape = 'u32[]', space=smem, size = 0x4, offset = 0x4, fixed_abs, tag = 'smem constant byte address 0x4 - core index']
  #allocation1 [shape = 'u32[144,128]{1,0:T(1,128)}', space=vmem, size = 0x12000, scoped, tag = 'internal scratch']
  %s0 = inlined_call_operand.vmem [shape: f32[1,128], index: 0, kind: input, shape index: {}]
  %s1 = inlined_call_operand.vmem [shape: f32[1,128], index: 1, kind: input, shape index: {}]
  %s2 = inlined_call_operand.vmem [shape: f32[1,128], index: 2, kind: input, shape index: {}]
  %s3 = inlined_call_operand.vmem [shape: f32[32,3], index: 3, kind: input, shape index: {}]
  %s4 = inlined_call_operand.vmem [shape: f32[32,1], index: 4, kind: input, shape index: {}]
  %s5 = inlined_call_operand.vmem [shape: f32[32,32], index: 5, kind: input, shape index: {}]
  %s6 = inlined_call_operand.vmem [shape: f32[32,1], index: 6, kind: input, shape index: {}]
  %s7 = inlined_call_operand.vmem [shape: f32[8,32], index: 7, kind: input, shape index: {}]
  %s8 = inlined_call_operand.vmem [shape: f32[8,1], index: 8, kind: input, shape index: {}]
  %s9 = inlined_call_operand.vmem [shape: f32[8,128], index: 9, kind: output, shape index: {}]
  %s10 = sld [smem:[#allocation0]]
  $region46: #{neural_net_forward.1} parent=0
    _
  %s12 = ssub.s32 1, %s10
  %s13 = scalar_select 0, %s12, %s10
  // Predicated region
  $region2: #{neural_net_forward.1} parent=0 // pred_check
    _
  $region3: #{neural_net_forward.1} parent=0 // pred_check_branch
    %15 = sbr.rel (0) target = $region5
  $region4: #{neural_net_forward.1} parent=0 // pred_region
    _
  $region5: #{neural_net_forward.1} parent=0 // pred_fallthru
    _
  // Predicated region
  $region6: #{neural_net_forward.1} parent=0 // pred_check
    _
  $region7: #{neural_net_forward.1} parent=0 // pred_check_branch
    %17 = sbr.rel (0) target = $region9
  $region8: #{neural_net_forward.1} parent=0 // pred_region
    _
  $region9: #{neural_net_forward.1} parent=0 // pred_fallthru
    _
  // Predicated region
  $region10: #{neural_net_forward.1} parent=0 // pred_check
    _
  $region11: #{neural_net_forward.1} parent=0 // pred_check_branch
    %19 = sbr.rel (0) target = $region13
  $region12: #{neural_net_forward.1} parent=0 // pred_region
    _
  $region13: #{neural_net_forward.1} parent=0 // pred_fallthru
    _
  // Predicated region
  $region14: #{neural_net_forward.1} parent=0 // pred_check
    _
  $region15: #{neural_net_forward.1} parent=0 // pred_check_branch
    %21 = sbr.rel (0) target = $region17
  $region16: #{neural_net_forward.1} parent=0 // pred_region
    _
  $region17: #{neural_net_forward.1} parent=0 // pred_fallthru
    _
  // Predicated region
  $region18: #{neural_net_forward.1} parent=0 // pred_check
    _
  $region19: #{neural_net_forward.1} parent=0 // pred_check_branch
    %23 = sbr.rel (0) target = $region21
  $region20: #{neural_net_forward.1} parent=0 // pred_region
    _
  $region21: #{neural_net_forward.1} parent=0 // pred_fallthru
    _
  // Predicated region
  $region22: #{neural_net_forward.1} parent=0 // pred_check
    _
  $region23: #{neural_net_forward.1} parent=0 // pred_check_branch
    %25 = sbr.rel (0) target = $region25
  $region24: #{neural_net_forward.1} parent=0 // pred_region
    _
  $region25: #{neural_net_forward.1} parent=0 // pred_fallthru
    _
  // Predicated region
  $region26: #{neural_net_forward.1} parent=0 // pred_check
    _
  $region27: #{neural_net_forward.1} parent=0 // pred_check_branch
    %27 = sbr.rel (0) target = $region29
  $region28: #{neural_net_forward.1} parent=0 // pred_region
    _
  $region29: #{neural_net_forward.1} parent=0 // pred_fallthru
    _
  // Predicated region
  $region30: #{neural_net_forward.1} parent=0 // pred_check
    _
  $region31: #{neural_net_forward.1} parent=0 // pred_check_branch
    %29 = sbr.rel (0) target = $region33
  $region32: #{neural_net_forward.1} parent=0 // pred_region
    _
  $region33: #{neural_net_forward.1} parent=0 // pred_fallthru
    _
  // Predicated region
  $region34: #{neural_net_forward.1} parent=0 // pred_check
    _
  $region35: #{neural_net_forward.1} parent=0 // pred_check_branch
    %31 = sbr.rel (0) target = $region37
  $region36: #{neural_net_forward.1} parent=0 // pred_region
    _
  $region37: #{neural_net_forward.1} parent=0 // pred_fallthru
    _
  %v32 = vld [vmem:[%s3] sm:$0xff]
  %v33 = vld [vmem:[%s3 + $0x8] sm:$0xff]
  %v34 = vld [vmem:[%s3 + $0x10] sm:$0xff]
  %v35 = vld [vmem:[%s3 + $0x18] sm:$0xff]
  %v36 = vld [vmem:[%s4] sm:$0xff]
  %v37 = vld [vmem:[%s4 + $0x8] sm:$0xff]
  %v38 = vld [vmem:[%s4 + $0x10] sm:$0xff]
  %v39 = vld [vmem:[%s4 + $0x18] sm:$0xff]
  %v40 = vld [vmem:[%s0] sm:$0x1]
  %42 = vset.pattern.permute.xlu0 0
  %43 = vperm.xlu0 %42, %v32
  %v44 = vpop.permute.xlu0 %43
  %47 = vset.pattern.permute.xlu0 0
  %48 = vperm.xlu0 %47, %v33
  %v49 = vpop.permute.xlu0 %48
  %52 = vset.pattern.permute.xlu0 0
  %53 = vperm.xlu0 %52, %v34
  %v54 = vpop.permute.xlu0 %53
  %57 = vset.pattern.permute.xlu0 0
  %58 = vperm.xlu0 %57, %v35
  %v59 = vpop.permute.xlu0 %58
  %v62 = vlaneseq
  %v63 = vshrl.u32 %v62, 7
  %v64 = vsub.s32 0, %v63
  %v65 = vrot.slane %v40, %v64
  %v67 = vmul.f32 %v44, %v65
  %v68 = vmul.f32 %v49, %v65
  %v69 = vmul.f32 %v54, %v65
  %v70 = vmul.f32 %v59, %v65
  %72 = vset.pattern.permute.xlu0 0
  %73 = vperm.xlu0 %72, %v36
  %v74 = vpop.permute.xlu0 %73
  %77 = vset.pattern.permute.xlu0 0
  %78 = vperm.xlu0 %77, %v37
  %v79 = vpop.permute.xlu0 %78
  %82 = vset.pattern.permute.xlu0 0
  %83 = vperm.xlu0 %82, %v38
  %v84 = vpop.permute.xlu0 %83
  %87 = vset.pattern.permute.xlu0 0
  %88 = vperm.xlu0 %87, %v39
  %v89 = vpop.permute.xlu0 %88
  %v91 = vadd.f32 %v74, %v67
  %v92 = vadd.f32 %v79, %v68
  %v93 = vadd.f32 %v84, %v69
  %v94 = vadd.f32 %v89, %v70
  %v95 = vld [vmem:[%s1] sm:$0x1]
  %96 = vset.pattern.permute.xlu0 1
  %97 = vperm.xlu0 %96, %v32
  %v98 = vpop.permute.xlu0 %97
  %100 = vset.pattern.permute.xlu0 1
  %101 = vperm.xlu0 %100, %v33
  %v102 = vpop.permute.xlu0 %101
  %104 = vset.pattern.permute.xlu0 1
  %105 = vperm.xlu0 %104, %v34
  %v106 = vpop.permute.xlu0 %105
  %108 = vset.pattern.permute.xlu0 1
  %109 = vperm.xlu0 %108, %v35
  %v110 = vpop.permute.xlu0 %109
  %v113 = vlaneseq
  %v114 = vshrl.u32 %v113, 7
  %v115 = vsub.s32 0, %v114
  %v116 = vrot.slane %v95, %v115
  %v118 = vmul.f32 %v98, %v116
  %v119 = vmul.f32 %v102, %v116
  %v120 = vmul.f32 %v106, %v116
  %v121 = vmul.f32 %v110, %v116
  %v122 = vadd.f32 %v91, %v118
  %v123 = vadd.f32 %v92, %v119
  %v124 = vadd.f32 %v93, %v120
  %v125 = vadd.f32 %v94, %v121
  %v126 = vld [vmem:[%s2] sm:$0x1]
  %127 = vset.pattern.permute.xlu0 2
  %128 = vperm.xlu0 %127, %v32
  %v129 = vpop.permute.xlu0 %128
  %131 = vset.pattern.permute.xlu0 2
  %132 = vperm.xlu0 %131, %v33
  %v133 = vpop.permute.xlu0 %132
  %135 = vset.pattern.permute.xlu0 2
  %136 = vperm.xlu0 %135, %v34
  %v137 = vpop.permute.xlu0 %136
  %139 = vset.pattern.permute.xlu0 2
  %140 = vperm.xlu0 %139, %v35
  %v141 = vpop.permute.xlu0 %140
  %v144 = vlaneseq
  %v145 = vshrl.u32 %v144, 7
  %v146 = vsub.s32 0, %v145
  %v147 = vrot.slane %v126, %v146
  %v149 = vmul.f32 %v129, %v147
  %v150 = vmul.f32 %v133, %v147
  %v151 = vmul.f32 %v137, %v147
  %v152 = vmul.f32 %v141, %v147
  %v153 = vadd.f32 %v122, %v149
  %v154 = vadd.f32 %v123, %v150
  %v155 = vadd.f32 %v124, %v151
  %v156 = vadd.f32 %v125, %v152
  %v157 = vand.u32 2147483647, %v153
  %vm158 = vcmp.le.f32.partialorder %v157, 0.7853982
  %vm159 = vcmp.lt.s32.totalorder %v153, 0
  %v160 = vand.u32 %v153, 2139095040
  %v161 = vshrl.u32 %v160, 23
  %v162 = vsub.s32 %v161, 127
  %v163 = vand.u32 2147483647, %v153
  %v164 = vand.u32 %v163, 8388607
  %v165 = vor.u32 %v164, 8388608
  %v166 = vsub.s32 0, %v165
  %v167 = vadd.s32 %v162, 1
  %vm168 = vcmp.gt.s32.totalorder %v167, 0
  %v169 = vsel %vm168, %v167, 0
  %v170 = vshrl.u32 %v169, 5
  %v171 = vand.u32 %v169, 31
  %v172 = vsub.s32 32, %v171
  %v173 = vshrl.u32 683565275, %v172
  %v174 = vshll.u32 683565275, %v171
  %v175 = vshrl.u32 2475754826, %v172
  %v176 = vor.u32 %v174, %v175
  %v177 = vshll.u32 2475754826, %v171
  %v178 = vshrl.u32 2131351028, %v172
  %v179 = vor.u32 %v177, %v178
  %v180 = vshll.u32 2131351028, %v171
  %v181 = vshrl.u32 2102212464, %v172
  %v182 = vor.u32 %v180, %v181
  %v183 = vshll.u32 2102212464, %v171
  %v184 = vshrl.u32 920167782, %v172
  %v185 = vor.u32 %v183, %v184
  %v186 = vshll.u32 920167782, %v171
  %v187 = vshrl.u32 1326507024, %v172
  %v188 = vor.u32 %v186, %v187
  %vm189 = vcmp.lt.s32.totalorder %v170, 1
  %vm190 = vcmp.lt.s32.totalorder %v170, 2
  %vm191 = vcmp.lt.s32.totalorder %v170, 3
  %vm192 = vcmp.lt.s32.totalorder %v170, 4
  %v193 = vsel %vm189, %v173, %v176
  %v194 = vsel %vm192, %v182, 2102212464
  %v195 = vsel %vm191, %v179, %v194
  %v196 = vsel %vm190, %v193, %v195
  %v197 = vsel %vm189, %v176, %v179
  %v198 = vsel %vm192, %v185, 920167782
  %v199 = vsel %vm191, %v182, %v198
  %v200 = vsel %vm190, %v197, %v199
  %v201 = vsel %vm189, %v179, %v182
  %v202 = vsel %vm192, %v188, 1326507024
  %v203 = vsel %vm191, %v185, %v202
  %v204 = vsel %vm190, %v201, %v203
  %v205 = vshll.u32 %v165, 8
  %v206 = vmul.u32.u64.compose %v205, %v204
  %v207 = vextract.low.u32 %v206
  %v208 = vextract.high.u32 %v206
  %v209 = vmul.u32.u64.compose %v205, %v200
  %v210 = vextract.low.u32 %v209
  %v211 = vextract.high.u32 %v209
  %v212 = vmul.u32 %v205, %v196
  %v213 = vadd.s32 %v208, %v210
  %vm214 = vc.u32 %v208, %v210
  %v215 = vadd.s32 %v211, 1
  %v216 = vsel %vm214, %v215, %v211
  %v217 = vadd.s32 %v212, %v216
  %v218 = vadd.s32 %v217, 536870912
  %v219 = vshrl.u32 %v218, 30
  %v220 = vshll.u32 %v219, 30
  %v221 = vsub.s32 %v217, %v220
  %vm222 = vcmp.lt.s32.totalorder %v221, 0
  %v223 = vsub.s32 0, %v221
  %v224 = vsel %vm222, %v223, %v221
  %v225 = vclz %v224
  %v226 = vsub.s32 %v225, 2
  %vm227 = vcmp.gt.s32.totalorder 0, %v226
  %v228 = vsel %vm227, 0, %v226
  %v229 = vsub.s32 32, %v228
  %v230 = vshll.u32 %v221, %v228
  %v231 = vshrl.u32 %v213, %v229
  %v232 = vor.u32 %v230, %v231
  %v233 = vsub.s32 4294967266, %v228
  %v234 = vadd.s32 %v233, 127
  %v235 = vshll.u32 %v234, 23
  %v236 = vor.u32 4788187, %v235
  %v237 = vand.u32 2147483647, %v236
  %v239 = vcvt.s32.f32 %v232
  %v240 = vmul.f32 %v239, %v237
  %v241 = vxor.u32 %v240, 2147483648
  %v242 = vsel %vm159, %v241, %v240
  %v243 = vsub.s32 4, %v219
  %v244 = vsel %vm159, %v243, %v219
  %v245 = vsel %vm158, %v153, %v242
  %v246 = vsel %vm158, 0, %v244
  %v247 = vcosq.f32.pop %v245
  %v248 = vsinq.f32.pop %v245
  %vm249 = vweird.f32 %v153
  %v250 = vadd.s32 %v246, 3
  %v251 = vand.u32 %v250, 3
  %vm252 = vcmp.lt.s32.totalorder %v251, 2
  %vm253 = vcmp.eq.s32.totalorder %v251, 0
  %v254 = vxor.u32 %v248, 2147483648
  %v255 = vsel %vm253, %v247, %v254
  %vm256 = vcmp.eq.s32.totalorder %v251, 2
  %v257 = vxor.u32 %v247, 2147483648
  %v258 = vsel %vm256, %v257, %v248
  %v259 = vsel %vm252, %v255, %v258
  %v260 = vsel %vm249, nan, %v259
  %v261 = vand.u32 2147483647, %v154
  %vm262 = vcmp.le.f32.partialorder %v261, 0.7853982
  %vm263 = vcmp.lt.s32.totalorder %v154, 0
  %v264 = vand.u32 %v154, 2139095040
  %v265 = vshrl.u32 %v264, 23
  %v266 = vsub.s32 %v265, 127
  %v267 = vand.u32 2147483647, %v154
  %v268 = vand.u32 %v267, 8388607
  %v269 = vor.u32 %v268, 8388608
  %v270 = vsub.s32 0, %v269
  %v271 = vadd.s32 %v266, 1
  %vm272 = vcmp.gt.s32.totalorder %v271, 0
  %v273 = vsel %vm272, %v271, 0
  %v274 = vshrl.u32 %v273, 5
  %v275 = vand.u32 %v273, 31
  %v276 = vsub.s32 32, %v275
  %v277 = vshrl.u32 683565275, %v276
  %v278 = vshll.u32 683565275, %v275
  %v279 = vshrl.u32 2475754826, %v276
  %v280 = vor.u32 %v278, %v279
  %v281 = vshll.u32 2475754826, %v275
  %v282 = vshrl.u32 2131351028, %v276
  %v283 = vor.u32 %v281, %v282
  %v284 = vshll.u32 2131351028, %v275
  %v285 = vshrl.u32 2102212464, %v276
  %v286 = vor.u32 %v284, %v285
  %v287 = vshll.u32 2102212464, %v275
  %v288 = vshrl.u32 920167782, %v276
  %v289 = vor.u32 %v287, %v288
  %v290 = vshll.u32 920167782, %v275
  %v291 = vshrl.u32 1326507024, %v276
  %v292 = vor.u32 %v290, %v291
  %vm293 = vcmp.lt.s32.totalorder %v274, 1
  %vm294 = vcmp.lt.s32.totalorder %v274, 2
  %vm295 = vcmp.lt.s32.totalorder %v274, 3
  %vm296 = vcmp.lt.s32.totalorder %v274, 4
  %v297 = vsel %vm293, %v277, %v280
  %v298 = vsel %vm296, %v286, 2102212464
  %v299 = vsel %vm295, %v283, %v298
  %v300 = vsel %vm294, %v297, %v299
  %v301 = vsel %vm293, %v280, %v283
  %v302 = vsel %vm296, %v289, 920167782
  %v303 = vsel %vm295, %v286, %v302
  %v304 = vsel %vm294, %v301, %v303
  %v305 = vsel %vm293, %v283, %v286
  %v306 = vsel %vm296, %v292, 1326507024
  %v307 = vsel %vm295, %v289, %v306
  %v308 = vsel %vm294, %v305, %v307
  %v309 = vshll.u32 %v269, 8
  %v310 = vmul.u32.u64.compose %v309, %v308
  %v311 = vextract.low.u32 %v310
  %v312 = vextract.high.u32 %v310
  %v313 = vmul.u32.u64.compose %v309, %v304
  %v314 = vextract.low.u32 %v313
  %v315 = vextract.high.u32 %v313
  %v316 = vmul.u32 %v309, %v300
  %v317 = vadd.s32 %v312, %v314
  %vm318 = vc.u32 %v312, %v314
  %v319 = vadd.s32 %v315, 1
  %v320 = vsel %vm318, %v319, %v315
  %v321 = vadd.s32 %v316, %v320
  %v322 = vadd.s32 %v321, 536870912
  %v323 = vshrl.u32 %v322, 30
  %v324 = vshll.u32 %v323, 30
  %v325 = vsub.s32 %v321, %v324
  %vm326 = vcmp.lt.s32.totalorder %v325, 0
  %v327 = vsub.s32 0, %v325
  %v328 = vsel %vm326, %v327, %v325
  %v329 = vclz %v328
  %v330 = vsub.s32 %v329, 2
  %vm331 = vcmp.gt.s32.totalorder 0, %v330
  %v332 = vsel %vm331, 0, %v330
  %v333 = vsub.s32 32, %v332
  %v334 = vshll.u32 %v325, %v332
  %v335 = vshrl.u32 %v317, %v333
  %v336 = vor.u32 %v334, %v335
  %v337 = vsub.s32 4294967266, %v332
  %v338 = vadd.s32 %v337, 127
  %v339 = vshll.u32 %v338, 23
  %v340 = vor.u32 4788187, %v339
  %v341 = vand.u32 2147483647, %v340
  %v343 = vcvt.s32.f32 %v336
  %v344 = vmul.f32 %v343, %v341
  %v345 = vxor.u32 %v344, 2147483648
  %v346 = vsel %vm263, %v345, %v344
  %v347 = vsub.s32 4, %v323
  %v348 = vsel %vm263, %v347, %v323
  %v349 = vsel %vm262, %v154, %v346
  %v350 = vsel %vm262, 0, %v348
  %v351 = vcosq.f32.pop %v349
  %v352 = vsinq.f32.pop %v349
  %vm353 = vweird.f32 %v154
  %v354 = vadd.s32 %v350, 3
  %v355 = vand.u32 %v354, 3
  %vm356 = vcmp.lt.s32.totalorder %v355, 2
  %vm357 = vcmp.eq.s32.totalorder %v355, 0
  %v358 = vxor.u32 %v352, 2147483648
  %v359 = vsel %vm357, %v351, %v358
  %vm360 = vcmp.eq.s32.totalorder %v355, 2
  %v361 = vxor.u32 %v351, 2147483648
  %v362 = vsel %vm360, %v361, %v352
  %v363 = vsel %vm356, %v359, %v362
  %v364 = vsel %vm353, nan, %v363
  %v365 = vand.u32 2147483647, %v155
  %vm366 = vcmp.le.f32.partialorder %v365, 0.7853982
  %vm367 = vcmp.lt.s32.totalorder %v155, 0
  %v368 = vand.u32 %v155, 2139095040
  %v369 = vshrl.u32 %v368, 23
  %v370 = vsub.s32 %v369, 127
  %v371 = vand.u32 2147483647, %v155
  %v372 = vand.u32 %v371, 8388607
  %v373 = vor.u32 %v372, 8388608
  %v374 = vsub.s32 0, %v373
  %v375 = vadd.s32 %v370, 1
  %vm376 = vcmp.gt.s32.totalorder %v375, 0
  %v377 = vsel %vm376, %v375, 0
  %v378 = vshrl.u32 %v377, 5
  %v379 = vand.u32 %v377, 31
  %v380 = vsub.s32 32, %v379
  %v381 = vshrl.u32 683565275, %v380
  %v382 = vshll.u32 683565275, %v379
  %v383 = vshrl.u32 2475754826, %v380
  %v384 = vor.u32 %v382, %v383
  %v385 = vshll.u32 2475754826, %v379
  %v386 = vshrl.u32 2131351028, %v380
  %v387 = vor.u32 %v385, %v386
  %v388 = vshll.u32 2131351028, %v379
  %v389 = vshrl.u32 2102212464, %v380
  %v390 = vor.u32 %v388, %v389
  %v391 = vshll.u32 2102212464, %v379
  %v392 = vshrl.u32 920167782, %v380
  %v393 = vor.u32 %v391, %v392
  %v394 = vshll.u32 920167782, %v379
  %v395 = vshrl.u32 1326507024, %v380
  %v396 = vor.u32 %v394, %v395
  %vm397 = vcmp.lt.s32.totalorder %v378, 1
  %vm398 = vcmp.lt.s32.totalorder %v378, 2
  %vm399 = vcmp.lt.s32.totalorder %v378, 3
  %vm400 = vcmp.lt.s32.totalorder %v378, 4
  %v401 = vsel %vm397, %v381, %v384
  %v402 = vsel %vm400, %v390, 2102212464
  %v403 = vsel %vm399, %v387, %v402
  %v404 = vsel %vm398, %v401, %v403
  %v405 = vsel %vm397, %v384, %v387
  %v406 = vsel %vm400, %v393, 920167782
  %v407 = vsel %vm399, %v390, %v406
  %v408 = vsel %vm398, %v405, %v407
  %v409 = vsel %vm397, %v387, %v390
  %v410 = vsel %vm400, %v396, 1326507024
  %v411 = vsel %vm399, %v393, %v410
  %v412 = vsel %vm398, %v409, %v411
  %v413 = vshll.u32 %v373, 8
  %v414 = vmul.u32.u64.compose %v413, %v412
  %v415 = vextract.low.u32 %v414
  %v416 = vextract.high.u32 %v414
  %v417 = vmul.u32.u64.compose %v413, %v408
  %v418 = vextract.low.u32 %v417
  %v419 = vextract.high.u32 %v417
  %v420 = vmul.u32 %v413, %v404
  %v421 = vadd.s32 %v416, %v418
  %vm422 = vc.u32 %v416, %v418
  %v423 = vadd.s32 %v419, 1
  %v424 = vsel %vm422, %v423, %v419
  %v425 = vadd.s32 %v420, %v424
  %v426 = vadd.s32 %v425, 536870912
  %v427 = vshrl.u32 %v426, 30
  %v428 = vshll.u32 %v427, 30
  %v429 = vsub.s32 %v425, %v428
  %vm430 = vcmp.lt.s32.totalorder %v429, 0
  %v431 = vsub.s32 0, %v429
  %v432 = vsel %vm430, %v431, %v429
  %v433 = vclz %v432
  %v434 = vsub.s32 %v433, 2
  %vm435 = vcmp.gt.s32.totalorder 0, %v434
  %v436 = vsel %vm435, 0, %v434
  %v437 = vsub.s32 32, %v436
  %v438 = vshll.u32 %v429, %v436
  %v439 = vshrl.u32 %v421, %v437
  %v440 = vor.u32 %v438, %v439
  %v441 = vsub.s32 4294967266, %v436
  %v442 = vadd.s32 %v441, 127
  %v443 = vshll.u32 %v442, 23
  %v444 = vor.u32 4788187, %v443
  %v445 = vand.u32 2147483647, %v444
  %v447 = vcvt.s32.f32 %v440
  %v448 = vmul.f32 %v447, %v445
  %v449 = vxor.u32 %v448, 2147483648
  %v450 = vsel %vm367, %v449, %v448
  %v451 = vsub.s32 4, %v427
  %v452 = vsel %vm367, %v451, %v427
  %v453 = vsel %vm366, %v155, %v450
  %v454 = vsel %vm366, 0, %v452
  %v455 = vcosq.f32.pop %v453
  %v456 = vsinq.f32.pop %v453
  %vm457 = vweird.f32 %v155
  %v458 = vadd.s32 %v454, 3
  %v459 = vand.u32 %v458, 3
  %vm460 = vcmp.lt.s32.totalorder %v459, 2
  %vm461 = vcmp.eq.s32.totalorder %v459, 0
  %v462 = vxor.u32 %v456, 2147483648
  %v463 = vsel %vm461, %v455, %v462
  %vm464 = vcmp.eq.s32.totalorder %v459, 2
  %v465 = vxor.u32 %v455, 2147483648
  %v466 = vsel %vm464, %v465, %v456
  %v467 = vsel %vm460, %v463, %v466
  %v468 = vsel %vm457, nan, %v467
  %v469 = vand.u32 2147483647, %v156
  %vm470 = vcmp.le.f32.partialorder %v469, 0.7853982
  %vm471 = vcmp.lt.s32.totalorder %v156, 0
  %v472 = vand.u32 %v156, 2139095040
  %v473 = vshrl.u32 %v472, 23
  %v474 = vsub.s32 %v473, 127
  %v475 = vand.u32 2147483647, %v156
  %v476 = vand.u32 %v475, 8388607
  %v477 = vor.u32 %v476, 8388608
  %v478 = vsub.s32 0, %v477
  %v479 = vadd.s32 %v474, 1
  %vm480 = vcmp.gt.s32.totalorder %v479, 0
  %v481 = vsel %vm480, %v479, 0
  %v482 = vshrl.u32 %v481, 5
  %v483 = vand.u32 %v481, 31
  %v484 = vsub.s32 32, %v483
  %v485 = vshrl.u32 683565275, %v484
  %v486 = vshll.u32 683565275, %v483
  %v487 = vshrl.u32 2475754826, %v484
  %v488 = vor.u32 %v486, %v487
  %v489 = vshll.u32 2475754826, %v483
  %v490 = vshrl.u32 2131351028, %v484
  %v491 = vor.u32 %v489, %v490
  %v492 = vshll.u32 2131351028, %v483
  %v493 = vshrl.u32 2102212464, %v484
  %v494 = vor.u32 %v492, %v493
  %v495 = vshll.u32 2102212464, %v483
  %v496 = vshrl.u32 920167782, %v484
  %v497 = vor.u32 %v495, %v496
  %v498 = vshll.u32 920167782, %v483
  %v499 = vshrl.u32 1326507024, %v484
  %v500 = vor.u32 %v498, %v499
  %vm501 = vcmp.lt.s32.totalorder %v482, 1
  %vm502 = vcmp.lt.s32.totalorder %v482, 2
  %vm503 = vcmp.lt.s32.totalorder %v482, 3
  %vm504 = vcmp.lt.s32.totalorder %v482, 4
  %v505 = vsel %vm501, %v485, %v488
  %v506 = vsel %vm504, %v494, 2102212464
  %v507 = vsel %vm503, %v491, %v506
  %v508 = vsel %vm502, %v505, %v507
  %v509 = vsel %vm501, %v488, %v491
  %v510 = vsel %vm504, %v497, 920167782
  %v511 = vsel %vm503, %v494, %v510
  %v512 = vsel %vm502, %v509, %v511
  %v513 = vsel %vm501, %v491, %v494
  %v514 = vsel %vm504, %v500, 1326507024
  %v515 = vsel %vm503, %v497, %v514
  %v516 = vsel %vm502, %v513, %v515
  %v517 = vshll.u32 %v477, 8
  %v518 = vmul.u32.u64.compose %v517, %v516
  %v519 = vextract.low.u32 %v518
  %v520 = vextract.high.u32 %v518
  %v521 = vmul.u32.u64.compose %v517, %v512
  %v522 = vextract.low.u32 %v521
  %v523 = vextract.high.u32 %v521
  %v524 = vmul.u32 %v517, %v508
  %v525 = vadd.s32 %v520, %v522
  %vm526 = vc.u32 %v520, %v522
  %v527 = vadd.s32 %v523, 1
  %v528 = vsel %vm526, %v527, %v523
  %v529 = vadd.s32 %v524, %v528
  %v530 = vadd.s32 %v529, 536870912
  %v531 = vshrl.u32 %v530, 30
  %v532 = vshll.u32 %v531, 30
  %v533 = vsub.s32 %v529, %v532
  %vm534 = vcmp.lt.s32.totalorder %v533, 0
  %v535 = vsub.s32 0, %v533
  %v536 = vsel %vm534, %v535, %v533
  %v537 = vclz %v536
  %v538 = vsub.s32 %v537, 2
  %vm539 = vcmp.gt.s32.totalorder 0, %v538
  %v540 = vsel %vm539, 0, %v538
  %v541 = vsub.s32 32, %v540
  %v542 = vshll.u32 %v533, %v540
  %v543 = vshrl.u32 %v525, %v541
  %v544 = vor.u32 %v542, %v543
  %v545 = vsub.s32 4294967266, %v540
  %v546 = vadd.s32 %v545, 127
  %v547 = vshll.u32 %v546, 23
  %v548 = vor.u32 4788187, %v547
  %v549 = vand.u32 2147483647, %v548
  %v551 = vcvt.s32.f32 %v544
  %v552 = vmul.f32 %v551, %v549
  %v553 = vxor.u32 %v552, 2147483648
  %v554 = vsel %vm471, %v553, %v552
  %v555 = vsub.s32 4, %v531
  %v556 = vsel %vm471, %v555, %v531
  %v557 = vsel %vm470, %v156, %v554
  %v558 = vsel %vm470, 0, %v556
  %v559 = vcosq.f32.pop %v557
  %v560 = vsinq.f32.pop %v557
  %vm561 = vweird.f32 %v156
  %v562 = vadd.s32 %v558, 3
  %v563 = vand.u32 %v562, 3
  %vm564 = vcmp.lt.s32.totalorder %v563, 2
  %vm565 = vcmp.eq.s32.totalorder %v563, 0
  %v566 = vxor.u32 %v560, 2147483648
  %v567 = vsel %vm565, %v559, %v566
  %vm568 = vcmp.eq.s32.totalorder %v563, 2
  %v569 = vxor.u32 %v559, 2147483648
  %v570 = vsel %vm568, %v569, %v560
  %v571 = vsel %vm564, %v567, %v570
  %v572 = vsel %vm561, nan, %v571
  %v573 = vld [vmem:[%s5] sm:$0xff]
  %v574 = vld [vmem:[%s5 + $0x8] sm:$0xff]
  %v575 = vld [vmem:[%s5 + $0x10] sm:$0xff]
  %v576 = vld [vmem:[%s5 + $0x18] sm:$0xff]
  %v577 = vld [vmem:[%s6] sm:$0xff]
  %v578 = vld [vmem:[%s6 + $0x8] sm:$0xff]
  %v579 = vld [vmem:[%s6 + $0x10] sm:$0xff]
  %v580 = vld [vmem:[%s6 + $0x18] sm:$0xff]
  %582 = vset.pattern.permute.xlu0 0
  %583 = vperm.xlu0 %582, %v577
  %v584 = vpop.permute.xlu0 %583
  %587 = vset.pattern.permute.xlu0 0
  %588 = vperm.xlu0 %587, %v578
  %v589 = vpop.permute.xlu0 %588
  %592 = vset.pattern.permute.xlu0 0
  %593 = vperm.xlu0 %592, %v579
  %v594 = vpop.permute.xlu0 %593
  %597 = vset.pattern.permute.xlu0 0
  %598 = vperm.xlu0 %597, %v580
  %v599 = vpop.permute.xlu0 %598
  %vm601 = vcmask 261120
  %v603 = vsel %vm601, %v573, 0
  %v606 = vsel %vm601, %v574, 0
  %v609 = vsel %vm601, %v575, 0
  %v612 = vsel %vm601, %v576, 0
  %614 = vmatprep.subr.mxu0 0.0
  %615 = vmatpush1.msra.mxu0 0.0
  %616 = vmatprep.subr.mxu0 0.0
  %617 = vmatpush1.msra.mxu0 0.0
  %618 = vmatprep.subr.mxu0 0.0
  %619 = vmatpush1.msra.mxu0 0.0
  %620 = vmatprep.subr.mxu0 0.0
  %621 = vmatpush1.msra.mxu0 0.0
  %622 = vmatprep.subr.mxu0 0.0
  %623 = vmatpush1.msra.mxu0 0.0
  %624 = vmatprep.subr.mxu0 0.0
  %625 = vmatpush1.msra.mxu0 0.0
  %626 = vmatprep.subr.mxu0 0.0
  %627 = vmatpush1.msra.mxu0 0.0
  %628 = vmatprep.subr.mxu0 0.0
  %629 = vmatpush1.msra.mxu0 0.0
  %630 = vmatprep.subr.mxu0 0.0
  %631 = vmatpush1.msra.mxu0 0.0
  %632 = vmatprep.subr.mxu0 0.0
  %633 = vmatpush1.msra.mxu0 0.0
  %634 = vmatprep.subr.mxu0 0.0
  %635 = vmatpush1.msra.mxu0 0.0
  %636 = vmatprep.subr.mxu0 0.0
  %637 = vmatpush1.msra.mxu0 0.0
  %638 = vmatprep.subr.mxu0 0.0
  %639 = vmatpush1.msra.mxu0 %v572
  %640 = vmatprep.subr.mxu0 0.0
  %641 = vmatpush1.msra.mxu0 %v468
  %642 = vmatprep.subr.mxu0 0.0
  %643 = vmatpush1.msra.mxu0 %v364
  %644 = vmatprep.subr.mxu0 0.0
  %645 = vmatpush1.msra.mxu0 %v260
  %646 = vmatprep.subr.mxu0 0.0
  %647 = vmatpush2.msra.mxu0 0.0
  %648 = vmatprep.subr.mxu0 0.0
  %649 = vmatpush2.msra.mxu0 0.0
  %650 = vmatprep.subr.mxu0 0.0
  %651 = vmatpush2.msra.mxu0 0.0
  %652 = vmatprep.subr.mxu0 0.0
  %653 = vmatpush2.msra.mxu0 0.0
  %654 = vmatprep.subr.mxu0 0.0
  %655 = vmatpush2.msra.mxu0 0.0
  %656 = vmatprep.subr.mxu0 0.0
  %657 = vmatpush2.msra.mxu0 0.0
  %658 = vmatprep.subr.mxu0 0.0
  %659 = vmatpush2.msra.mxu0 0.0
  %660 = vmatprep.subr.mxu0 0.0
  %661 = vmatpush2.msra.mxu0 0.0
  %662 = vmatprep.subr.mxu0 0.0
  %663 = vmatpush2.msra.mxu0 0.0
  %664 = vmatprep.subr.mxu0 0.0
  %665 = vmatpush2.msra.mxu0 0.0
  %666 = vmatprep.subr.mxu0 0.0
  %667 = vmatpush2.msra.mxu0 0.0
  %668 = vmatprep.subr.mxu0 0.0
  %669 = vmatpush2.msra.mxu0 0.0
  %670 = vmatprep.subr.mxu0 0.0
  %671 = vmatpush2.msra.mxu0 0.0
  %672 = vmatprep.subr.mxu0 0.0
  %673 = vmatpush2.msra.mxu0 0.0
  %674 = vmatprep.subr.mxu0 0.0
  %675 = vmatpush2.msra.mxu0 0.0
  %676 = vmatprep.subr.mxu0 0.0
  %677 = vmatpush2.msra.mxu0 0.0
  %678 = vmatprep.mubr.f32.mxu0 0.0
  %679 = vmatmul.mubr.f32.gmra.mxu0 %v603
  %v680 = vpop.f32.mrf.mxu0
  %v681 = vadd.f32 %v584, %v680
  %v682 = vpop.f32.mrf.mxu0
  %683 = vmatprep.mubr.f32.mxu0 0.0
  %684 = vmatmul.mubr.f32.gmra.mxu0 %v606
  %v685 = vpop.f32.mrf.mxu0
  %v686 = vadd.f32 %v589, %v685
  %v687 = vpop.f32.mrf.mxu0
  %688 = vmatprep.mubr.f32.mxu0 0.0
  %689 = vmatmul.mubr.f32.gmra.mxu0 %v609
  %v690 = vpop.f32.mrf.mxu0
  %v691 = vadd.f32 %v594, %v690
  %v692 = vpop.f32.mrf.mxu0
  %693 = vmatprep.mubr.f32.mxu0 0.0
  %694 = vmatmul.mubr.f32.gmra.mxu0 %v612
  %v695 = vpop.f32.mrf.mxu0
  %v696 = vadd.f32 %v599, %v695
  %v697 = vpop.f32.mrf.mxu0
  %698 = vdwg.mxu0
  %v699 = vand.u32 2147483647, %v681
  %vm700 = vcmp.le.f32.partialorder %v699, 0.7853982
  %vm701 = vcmp.lt.s32.totalorder %v681, 0
  %v702 = vand.u32 %v681, 2139095040
  %v703 = vshrl.u32 %v702, 23
  %v704 = vsub.s32 %v703, 127
  %v705 = vand.u32 2147483647, %v681
  %v706 = vand.u32 %v705, 8388607
  %v707 = vor.u32 %v706, 8388608
  %v708 = vsub.s32 0, %v707
  %v709 = vadd.s32 %v704, 1
  %vm710 = vcmp.gt.s32.totalorder %v709, 0
  %v711 = vsel %vm710, %v709, 0
  %v712 = vshrl.u32 %v711, 5
  %v713 = vand.u32 %v711, 31
  %v714 = vsub.s32 32, %v713
  %v715 = vshrl.u32 683565275, %v714
  %v716 = vshll.u32 683565275, %v713
  %v717 = vshrl.u32 2475754826, %v714
  %v718 = vor.u32 %v716, %v717
  %v719 = vshll.u32 2475754826, %v713
  %v720 = vshrl.u32 2131351028, %v714
  %v721 = vor.u32 %v719, %v720
  %v722 = vshll.u32 2131351028, %v713
  %v723 = vshrl.u32 2102212464, %v714
  %v724 = vor.u32 %v722, %v723
  %v725 = vshll.u32 2102212464, %v713
  %v726 = vshrl.u32 920167782, %v714
  %v727 = vor.u32 %v725, %v726
  %v728 = vshll.u32 920167782, %v713
  %v729 = vshrl.u32 1326507024, %v714
  %v730 = vor.u32 %v728, %v729
  %vm731 = vcmp.lt.s32.totalorder %v712, 1
  %vm732 = vcmp.lt.s32.totalorder %v712, 2
  %vm733 = vcmp.lt.s32.totalorder %v712, 3
  %vm734 = vcmp.lt.s32.totalorder %v712, 4
  %v735 = vsel %vm731, %v715, %v718
  %v736 = vsel %vm734, %v724, 2102212464
  %v737 = vsel %vm733, %v721, %v736
  %v738 = vsel %vm732, %v735, %v737
  %v739 = vsel %vm731, %v718, %v721
  %v740 = vsel %vm734, %v727, 920167782
  %v741 = vsel %vm733, %v724, %v740
  %v742 = vsel %vm732, %v739, %v741
  %v743 = vsel %vm731, %v721, %v724
  %v744 = vsel %vm734, %v730, 1326507024
  %v745 = vsel %vm733, %v727, %v744
  %v746 = vsel %vm732, %v743, %v745
  %v747 = vshll.u32 %v707, 8
  %v748 = vmul.u32.u64.compose %v747, %v746
  %v749 = vextract.low.u32 %v748
  %v750 = vextract.high.u32 %v748
  %v751 = vmul.u32.u64.compose %v747, %v742
  %v752 = vextract.low.u32 %v751
  %v753 = vextract.high.u32 %v751
  %v754 = vmul.u32 %v747, %v738
  %v755 = vadd.s32 %v750, %v752
  %vm756 = vc.u32 %v750, %v752
  %v757 = vadd.s32 %v753, 1
  %v758 = vsel %vm756, %v757, %v753
  %v759 = vadd.s32 %v754, %v758
  %v760 = vadd.s32 %v759, 536870912
  %v761 = vshrl.u32 %v760, 30
  %v762 = vshll.u32 %v761, 30
  %v763 = vsub.s32 %v759, %v762
  %vm764 = vcmp.lt.s32.totalorder %v763, 0
  %v765 = vsub.s32 0, %v763
  %v766 = vsel %vm764, %v765, %v763
  %v767 = vclz %v766
  %v768 = vsub.s32 %v767, 2
  %vm769 = vcmp.gt.s32.totalorder 0, %v768
  %v770 = vsel %vm769, 0, %v768
  %v771 = vsub.s32 32, %v770
  %v772 = vshll.u32 %v763, %v770
  %v773 = vshrl.u32 %v755, %v771
  %v774 = vor.u32 %v772, %v773
  %v775 = vsub.s32 4294967266, %v770
  %v776 = vadd.s32 %v775, 127
  %v777 = vshll.u32 %v776, 23
  %v778 = vor.u32 4788187, %v777
  %v779 = vand.u32 2147483647, %v778
  %v781 = vcvt.s32.f32 %v774
  %v782 = vmul.f32 %v781, %v779
  %v783 = vxor.u32 %v782, 2147483648
  %v784 = vsel %vm701, %v783, %v782
  %v785 = vsub.s32 4, %v761
  %v786 = vsel %vm701, %v785, %v761
  %v787 = vsel %vm700, %v681, %v784
  %v788 = vsel %vm700, 0, %v786
  %v789 = vcosq.f32.pop %v787
  %v790 = vsinq.f32.pop %v787
  %vm791 = vweird.f32 %v681
  %v792 = vadd.s32 %v788, 3
  %v793 = vand.u32 %v792, 3
  %vm794 = vcmp.lt.s32.totalorder %v793, 2
  %vm795 = vcmp.eq.s32.totalorder %v793, 0
  %v796 = vxor.u32 %v790, 2147483648
  %v797 = vsel %vm795, %v789, %v796
  %vm798 = vcmp.eq.s32.totalorder %v793, 2
  %v799 = vxor.u32 %v789, 2147483648
  %v800 = vsel %vm798, %v799, %v790
  %v801 = vsel %vm794, %v797, %v800
  %v802 = vsel %vm791, nan, %v801
  %v803 = vand.u32 2147483647, %v686
  %vm804 = vcmp.le.f32.partialorder %v803, 0.7853982
  %vm805 = vcmp.lt.s32.totalorder %v686, 0
  %v806 = vand.u32 %v686, 2139095040
  %v807 = vshrl.u32 %v806, 23
  %v808 = vsub.s32 %v807, 127
  %v809 = vand.u32 2147483647, %v686
  %v810 = vand.u32 %v809, 8388607
  %v811 = vor.u32 %v810, 8388608
  %v812 = vsub.s32 0, %v811
  %v813 = vadd.s32 %v808, 1
  %vm814 = vcmp.gt.s32.totalorder %v813, 0
  %v815 = vsel %vm814, %v813, 0
  %v816 = vshrl.u32 %v815, 5
  %v817 = vand.u32 %v815, 31
  %v818 = vsub.s32 32, %v817
  %v819 = vshrl.u32 683565275, %v818
  %v820 = vshll.u32 683565275, %v817
  %v821 = vshrl.u32 2475754826, %v818
  %v822 = vor.u32 %v820, %v821
  %v823 = vshll.u32 2475754826, %v817
  %v824 = vshrl.u32 2131351028, %v818
  %v825 = vor.u32 %v823, %v824
  %v826 = vshll.u32 2131351028, %v817
  %v827 = vshrl.u32 2102212464, %v818
  %v828 = vor.u32 %v826, %v827
  %v829 = vshll.u32 2102212464, %v817
  %v830 = vshrl.u32 920167782, %v818
  %v831 = vor.u32 %v829, %v830
  %v832 = vshll.u32 920167782, %v817
  %v833 = vshrl.u32 1326507024, %v818
  %v834 = vor.u32 %v832, %v833
  %vm835 = vcmp.lt.s32.totalorder %v816, 1
  %vm836 = vcmp.lt.s32.totalorder %v816, 2
  %vm837 = vcmp.lt.s32.totalorder %v816, 3
  %vm838 = vcmp.lt.s32.totalorder %v816, 4
  %v839 = vsel %vm835, %v819, %v822
  %v840 = vsel %vm838, %v828, 2102212464
  %v841 = vsel %vm837, %v825, %v840
  %v842 = vsel %vm836, %v839, %v841
  %v843 = vsel %vm835, %v822, %v825
  %v844 = vsel %vm838, %v831, 920167782
  %v845 = vsel %vm837, %v828, %v844
  %v846 = vsel %vm836, %v843, %v845
  %v847 = vsel %vm835, %v825, %v828
  %v848 = vsel %vm838, %v834, 1326507024
  %v849 = vsel %vm837, %v831, %v848
  %v850 = vsel %vm836, %v847, %v849
  %v851 = vshll.u32 %v811, 8
  %v852 = vmul.u32.u64.compose %v851, %v850
  %v853 = vextract.low.u32 %v852
  %v854 = vextract.high.u32 %v852
  %v855 = vmul.u32.u64.compose %v851, %v846
  %v856 = vextract.low.u32 %v855
  %v857 = vextract.high.u32 %v855
  %v858 = vmul.u32 %v851, %v842
  %v859 = vadd.s32 %v854, %v856
  %vm860 = vc.u32 %v854, %v856
  %v861 = vadd.s32 %v857, 1
  %v862 = vsel %vm860, %v861, %v857
  %v863 = vadd.s32 %v858, %v862
  %v864 = vadd.s32 %v863, 536870912
  %v865 = vshrl.u32 %v864, 30
  %v866 = vshll.u32 %v865, 30
  %v867 = vsub.s32 %v863, %v866
  %vm868 = vcmp.lt.s32.totalorder %v867, 0
  %v869 = vsub.s32 0, %v867
  %v870 = vsel %vm868, %v869, %v867
  %v871 = vclz %v870
  %v872 = vsub.s32 %v871, 2
  %vm873 = vcmp.gt.s32.totalorder 0, %v872
  %v874 = vsel %vm873, 0, %v872
  %v875 = vsub.s32 32, %v874
  %v876 = vshll.u32 %v867, %v874
  %v877 = vshrl.u32 %v859, %v875
  %v878 = vor.u32 %v876, %v877
  %v879 = vsub.s32 4294967266, %v874
  %v880 = vadd.s32 %v879, 127
  %v881 = vshll.u32 %v880, 23
  %v882 = vor.u32 4788187, %v881
  %v883 = vand.u32 2147483647, %v882
  %v885 = vcvt.s32.f32 %v878
  %v886 = vmul.f32 %v885, %v883
  %v887 = vxor.u32 %v886, 2147483648
  %v888 = vsel %vm805, %v887, %v886
  %v889 = vsub.s32 4, %v865
  %v890 = vsel %vm805, %v889, %v865
  %v891 = vsel %vm804, %v686, %v888
  %v892 = vsel %vm804, 0, %v890
  %v893 = vcosq.f32.pop %v891
  %v894 = vsinq.f32.pop %v891
  %vm895 = vweird.f32 %v686
  %v896 = vadd.s32 %v892, 3
  %v897 = vand.u32 %v896, 3
  %vm898 = vcmp.lt.s32.totalorder %v897, 2
  %vm899 = vcmp.eq.s32.totalorder %v897, 0
  %v900 = vxor.u32 %v894, 2147483648
  %v901 = vsel %vm899, %v893, %v900
  %vm902 = vcmp.eq.s32.totalorder %v897, 2
  %v903 = vxor.u32 %v893, 2147483648
  %v904 = vsel %vm902, %v903, %v894
  %v905 = vsel %vm898, %v901, %v904
  %v906 = vsel %vm895, nan, %v905
  %v907 = vand.u32 2147483647, %v691
  %vm908 = vcmp.le.f32.partialorder %v907, 0.7853982
  %vm909 = vcmp.lt.s32.totalorder %v691, 0
  %v910 = vand.u32 %v691, 2139095040
  %v911 = vshrl.u32 %v910, 23
  %v912 = vsub.s32 %v911, 127
  %v913 = vand.u32 2147483647, %v691
  %v914 = vand.u32 %v913, 8388607
  %v915 = vor.u32 %v914, 8388608
  %v916 = vsub.s32 0, %v915
  %v917 = vadd.s32 %v912, 1
  %vm918 = vcmp.gt.s32.totalorder %v917, 0
  %v919 = vsel %vm918, %v917, 0
  %v920 = vshrl.u32 %v919, 5
  %v921 = vand.u32 %v919, 31
  %v922 = vsub.s32 32, %v921
  %v923 = vshrl.u32 683565275, %v922
  %v924 = vshll.u32 683565275, %v921
  %v925 = vshrl.u32 2475754826, %v922
  %v926 = vor.u32 %v924, %v925
  %v927 = vshll.u32 2475754826, %v921
  %v928 = vshrl.u32 2131351028, %v922
  %v929 = vor.u32 %v927, %v928
  %v930 = vshll.u32 2131351028, %v921
  %v931 = vshrl.u32 2102212464, %v922
  %v932 = vor.u32 %v930, %v931
  %v933 = vshll.u32 2102212464, %v921
  %v934 = vshrl.u32 920167782, %v922
  %v935 = vor.u32 %v933, %v934
  %v936 = vshll.u32 920167782, %v921
  %v937 = vshrl.u32 1326507024, %v922
  %v938 = vor.u32 %v936, %v937
  %vm939 = vcmp.lt.s32.totalorder %v920, 1
  %vm940 = vcmp.lt.s32.totalorder %v920, 2
  %vm941 = vcmp.lt.s32.totalorder %v920, 3
  %vm942 = vcmp.lt.s32.totalorder %v920, 4
  %v943 = vsel %vm939, %v923, %v926
  %v944 = vsel %vm942, %v932, 2102212464
  %v945 = vsel %vm941, %v929, %v944
  %v946 = vsel %vm940, %v943, %v945
  %v947 = vsel %vm939, %v926, %v929
  %v948 = vsel %vm942, %v935, 920167782
  %v949 = vsel %vm941, %v932, %v948
  %v950 = vsel %vm940, %v947, %v949
  %v951 = vsel %vm939, %v929, %v932
  %v952 = vsel %vm942, %v938, 1326507024
  %v953 = vsel %vm941, %v935, %v952
  %v954 = vsel %vm940, %v951, %v953
  %v955 = vshll.u32 %v915, 8
  %v956 = vmul.u32.u64.compose %v955, %v954
  %v957 = vextract.low.u32 %v956
  %v958 = vextract.high.u32 %v956
  %v959 = vmul.u32.u64.compose %v955, %v950
  %v960 = vextract.low.u32 %v959
  %v961 = vextract.high.u32 %v959
  %v962 = vmul.u32 %v955, %v946
  %v963 = vadd.s32 %v958, %v960
  %vm964 = vc.u32 %v958, %v960
  %v965 = vadd.s32 %v961, 1
  %v966 = vsel %vm964, %v965, %v961
  %v967 = vadd.s32 %v962, %v966
  %v968 = vadd.s32 %v967, 536870912
  %v969 = vshrl.u32 %v968, 30
  %v970 = vshll.u32 %v969, 30
  %v971 = vsub.s32 %v967, %v970
  %vm972 = vcmp.lt.s32.totalorder %v971, 0
  %v973 = vsub.s32 0, %v971
  %v974 = vsel %vm972, %v973, %v971
  %v975 = vclz %v974
  %v976 = vsub.s32 %v975, 2
  %vm977 = vcmp.gt.s32.totalorder 0, %v976
  %v978 = vsel %vm977, 0, %v976
  %v979 = vsub.s32 32, %v978
  %v980 = vshll.u32 %v971, %v978
  %v981 = vshrl.u32 %v963, %v979
  %v982 = vor.u32 %v980, %v981
  %v983 = vsub.s32 4294967266, %v978
  %v984 = vadd.s32 %v983, 127
  %v985 = vshll.u32 %v984, 23
  %v986 = vor.u32 4788187, %v985
  %v987 = vand.u32 2147483647, %v986
  %v989 = vcvt.s32.f32 %v982
  %v990 = vmul.f32 %v989, %v987
  %v991 = vxor.u32 %v990, 2147483648
  %v992 = vsel %vm909, %v991, %v990
  %v993 = vsub.s32 4, %v969
  %v994 = vsel %vm909, %v993, %v969
  %v995 = vsel %vm908, %v691, %v992
  %v996 = vsel %vm908, 0, %v994
  %v997 = vcosq.f32.pop %v995
  %v998 = vsinq.f32.pop %v995
  %vm999 = vweird.f32 %v691
  %v1000 = vadd.s32 %v996, 3
  %v1001 = vand.u32 %v1000, 3
  %vm1002 = vcmp.lt.s32.totalorder %v1001, 2
  %vm1003 = vcmp.eq.s32.totalorder %v1001, 0
  %v1004 = vxor.u32 %v998, 2147483648
  %v1005 = vsel %vm1003, %v997, %v1004
  %vm1006 = vcmp.eq.s32.totalorder %v1001, 2
  %v1007 = vxor.u32 %v997, 2147483648
  %v1008 = vsel %vm1006, %v1007, %v998
  %v1009 = vsel %vm1002, %v1005, %v1008
  %v1010 = vsel %vm999, nan, %v1009
  %v1011 = vand.u32 2147483647, %v696
  %vm1012 = vcmp.le.f32.partialorder %v1011, 0.7853982
  %vm1013 = vcmp.lt.s32.totalorder %v696, 0
  %v1014 = vand.u32 %v696, 2139095040
  %v1015 = vshrl.u32 %v1014, 23
  %v1016 = vsub.s32 %v1015, 127
  %v1017 = vand.u32 2147483647, %v696
  %v1018 = vand.u32 %v1017, 8388607
  %v1019 = vor.u32 %v1018, 8388608
  %v1020 = vsub.s32 0, %v1019
  %v1021 = vadd.s32 %v1016, 1
  %vm1022 = vcmp.gt.s32.totalorder %v1021, 0
  %v1023 = vsel %vm1022, %v1021, 0
  %v1024 = vshrl.u32 %v1023, 5
  %v1025 = vand.u32 %v1023, 31
  %v1026 = vsub.s32 32, %v1025
  %v1027 = vshrl.u32 683565275, %v1026
  %v1028 = vshll.u32 683565275, %v1025
  %v1029 = vshrl.u32 2475754826, %v1026
  %v1030 = vor.u32 %v1028, %v1029
  %v1031 = vshll.u32 2475754826, %v1025
  %v1032 = vshrl.u32 2131351028, %v1026
  %v1033 = vor.u32 %v1031, %v1032
  %v1034 = vshll.u32 2131351028, %v1025
  %v1035 = vshrl.u32 2102212464, %v1026
  %v1036 = vor.u32 %v1034, %v1035
  %v1037 = vshll.u32 2102212464, %v1025
  %v1038 = vshrl.u32 920167782, %v1026
  %v1039 = vor.u32 %v1037, %v1038
  %v1040 = vshll.u32 920167782, %v1025
  %v1041 = vshrl.u32 1326507024, %v1026
  %v1042 = vor.u32 %v1040, %v1041
  %vm1043 = vcmp.lt.s32.totalorder %v1024, 1
  %vm1044 = vcmp.lt.s32.totalorder %v1024, 2
  %vm1045 = vcmp.lt.s32.totalorder %v1024, 3
  %vm1046 = vcmp.lt.s32.totalorder %v1024, 4
  %v1047 = vsel %vm1043, %v1027, %v1030
  %v1048 = vsel %vm1046, %v1036, 2102212464
  %v1049 = vsel %vm1045, %v1033, %v1048
  %v1050 = vsel %vm1044, %v1047, %v1049
  %v1051 = vsel %vm1043, %v1030, %v1033
  %v1052 = vsel %vm1046, %v1039, 920167782
  %v1053 = vsel %vm1045, %v1036, %v1052
  %v1054 = vsel %vm1044, %v1051, %v1053
  %v1055 = vsel %vm1043, %v1033, %v1036
  %v1056 = vsel %vm1046, %v1042, 1326507024
  %v1057 = vsel %vm1045, %v1039, %v1056
  %v1058 = vsel %vm1044, %v1055, %v1057
  %v1059 = vshll.u32 %v1019, 8
  %v1060 = vmul.u32.u64.compose %v1059, %v1058
  %v1061 = vextract.low.u32 %v1060
  %v1062 = vextract.high.u32 %v1060
  %v1063 = vmul.u32.u64.compose %v1059, %v1054
  %v1064 = vextract.low.u32 %v1063
  %v1065 = vextract.high.u32 %v1063
  %v1066 = vmul.u32 %v1059, %v1050
  %v1067 = vadd.s32 %v1062, %v1064
  %vm1068 = vc.u32 %v1062, %v1064
  %v1069 = vadd.s32 %v1065, 1
  %v1070 = vsel %vm1068, %v1069, %v1065
  %v1071 = vadd.s32 %v1066, %v1070
  %v1072 = vadd.s32 %v1071, 536870912
  %v1073 = vshrl.u32 %v1072, 30
  %v1074 = vshll.u32 %v1073, 30
  %v1075 = vsub.s32 %v1071, %v1074
  %vm1076 = vcmp.lt.s32.totalorder %v1075, 0
  %v1077 = vsub.s32 0, %v1075
  %v1078 = vsel %vm1076, %v1077, %v1075
  %v1079 = vclz %v1078
  %v1080 = vsub.s32 %v1079, 2
  %vm1081 = vcmp.gt.s32.totalorder 0, %v1080
  %v1082 = vsel %vm1081, 0, %v1080
  %v1083 = vsub.s32 32, %v1082
  %v1084 = vshll.u32 %v1075, %v1082
  %v1085 = vshrl.u32 %v1067, %v1083
  %v1086 = vor.u32 %v1084, %v1085
  %v1087 = vsub.s32 4294967266, %v1082
  %v1088 = vadd.s32 %v1087, 127
  %v1089 = vshll.u32 %v1088, 23
  %v1090 = vor.u32 4788187, %v1089
  %v1091 = vand.u32 2147483647, %v1090
  %v1093 = vcvt.s32.f32 %v1086
  %v1094 = vmul.f32 %v1093, %v1091
  %v1095 = vxor.u32 %v1094, 2147483648
  %v1096 = vsel %vm1013, %v1095, %v1094
  %v1097 = vsub.s32 4, %v1073
  %v1098 = vsel %vm1013, %v1097, %v1073
  %v1099 = vsel %vm1012, %v696, %v1096
  %v1100 = vsel %vm1012, 0, %v1098
  %v1101 = vcosq.f32.pop %v1099
  %v1102 = vsinq.f32.pop %v1099
  %vm1103 = vweird.f32 %v696
  %v1104 = vadd.s32 %v1100, 3
  %v1105 = vand.u32 %v1104, 3
  %vm1106 = vcmp.lt.s32.totalorder %v1105, 2
  %vm1107 = vcmp.eq.s32.totalorder %v1105, 0
  %v1108 = vxor.u32 %v1102, 2147483648
  %v1109 = vsel %vm1107, %v1101, %v1108
  %vm1110 = vcmp.eq.s32.totalorder %v1105, 2
  %v1111 = vxor.u32 %v1101, 2147483648
  %v1112 = vsel %vm1110, %v1111, %v1102
  %v1113 = vsel %vm1106, %v1109, %v1112
  %v1114 = vsel %vm1103, nan, %v1113
  %v1115 = vld [vmem:[%s7] sm:$0xff]
  %v1116 = vld [vmem:[%s8] sm:$0xff]
  %1118 = vset.pattern.permute.xlu0 0
  %1119 = vperm.xlu0 %1118, %v1116
  %v1120 = vpop.permute.xlu0 %1119
  %v1123 = vsel %vm601, %v1115, 0
  %1125 = vmatprep.subr.mxu0 0.0
  %1126 = vmatpush1.msra.mxu0 0.0
  %1127 = vmatprep.subr.mxu0 0.0
  %1128 = vmatpush1.msra.mxu0 0.0
  %1129 = vmatprep.subr.mxu0 0.0
  %1130 = vmatpush1.msra.mxu0 0.0
  %1131 = vmatprep.subr.mxu0 0.0
  %1132 = vmatpush1.msra.mxu0 0.0
  %1133 = vmatprep.subr.mxu0 0.0
  %1134 = vmatpush1.msra.mxu0 0.0
  %1135 = vmatprep.subr.mxu0 0.0
  %1136 = vmatpush1.msra.mxu0 0.0
  %1137 = vmatprep.subr.mxu0 0.0
  %1138 = vmatpush1.msra.mxu0 0.0
  %1139 = vmatprep.subr.mxu0 0.0
  %1140 = vmatpush1.msra.mxu0 0.0
  %1141 = vmatprep.subr.mxu0 0.0
  %1142 = vmatpush1.msra.mxu0 0.0
  %1143 = vmatprep.subr.mxu0 0.0
  %1144 = vmatpush1.msra.mxu0 0.0
  %1145 = vmatprep.subr.mxu0 0.0
  %1146 = vmatpush1.msra.mxu0 0.0
  %1147 = vmatprep.subr.mxu0 0.0
  %1148 = vmatpush1.msra.mxu0 0.0
  %1149 = vmatprep.subr.mxu0 0.0
  %1150 = vmatpush1.msra.mxu0 %v1114
  %1151 = vmatprep.subr.mxu0 0.0
  %1152 = vmatpush1.msra.mxu0 %v1010
  %1153 = vmatprep.subr.mxu0 0.0
  %1154 = vmatpush1.msra.mxu0 %v906
  %1155 = vmatprep.subr.mxu0 0.0
  %1156 = vmatpush1.msra.mxu0 %v802
  %1157 = vmatprep.subr.mxu0 0.0
  %1158 = vmatpush2.msra.mxu0 0.0
  %1159 = vmatprep.subr.mxu0 0.0
  %1160 = vmatpush2.msra.mxu0 0.0
  %1161 = vmatprep.subr.mxu0 0.0
  %1162 = vmatpush2.msra.mxu0 0.0
  %1163 = vmatprep.subr.mxu0 0.0
  %1164 = vmatpush2.msra.mxu0 0.0
  %1165 = vmatprep.subr.mxu0 0.0
  %1166 = vmatpush2.msra.mxu0 0.0
  %1167 = vmatprep.subr.mxu0 0.0
  %1168 = vmatpush2.msra.mxu0 0.0
  %1169 = vmatprep.subr.mxu0 0.0
  %1170 = vmatpush2.msra.mxu0 0.0
  %1171 = vmatprep.subr.mxu0 0.0
  %1172 = vmatpush2.msra.mxu0 0.0
  %1173 = vmatprep.subr.mxu0 0.0
  %1174 = vmatpush2.msra.mxu0 0.0
  %1175 = vmatprep.subr.mxu0 0.0
  %1176 = vmatpush2.msra.mxu0 0.0
  %1177 = vmatprep.subr.mxu0 0.0
  %1178 = vmatpush2.msra.mxu0 0.0
  %1179 = vmatprep.subr.mxu0 0.0
  %1180 = vmatpush2.msra.mxu0 0.0
  %1181 = vmatprep.subr.mxu0 0.0
  %1182 = vmatpush2.msra.mxu0 0.0
  %1183 = vmatprep.subr.mxu0 0.0
  %1184 = vmatpush2.msra.mxu0 0.0
  %1185 = vmatprep.subr.mxu0 0.0
  %1186 = vmatpush2.msra.mxu0 0.0
  %1187 = vmatprep.subr.mxu0 0.0
  %1188 = vmatpush2.msra.mxu0 0.0
  %1189 = vmatprep.mubr.f32.mxu0 0.0
  %1190 = vmatmul.mubr.f32.gmra.mxu0 %v1123
  %v1191 = vpop.f32.mrf.mxu0
  %v1192 = vadd.f32 %v1120, %v1191
  %v1193 = vpop.f32.mrf.mxu0
  %1194 = vdwg.mxu0
  %1195 = vst [vmem:[%s9] sm:$0xff] %v1192
  // Predicated region
  $region38: #{neural_net_forward.1} parent=0 // pred_check
    _
  $region39: #{neural_net_forward.1} parent=0 // pred_check_branch
    %1197 = sbr.rel (0) target = $region41
  $region40: #{neural_net_forward.1} parent=0 // pred_region
    _
  $region41: #{neural_net_forward.1} parent=0 // pred_fallthru
    _
  // Predicated region
  $region42: #{neural_net_forward.1} parent=0 // pred_check
    _
  $region43: #{neural_net_forward.1} parent=0 // pred_check_branch
    %1199 = sbr.rel (0) target = $region45
  $region44: #{neural_net_forward.1} parent=0 // pred_region
    _
  $region45: #{neural_net_forward.1} parent=0 // pred_fallthru
    _

</llo_original>
